<compile_context>
chip_gen: v6e
topology: v6e:2x2x1
jax: 0.10.0
libtpu: 0.0.40
codegen_flags: <defaults>
</compile_context>

<pallas_src>
import functools

import numpy as np
import jax
import jax.numpy as jnp
from jax import lax
from jax.experimental import pallas as pl
from jax.experimental.pallas import tpu as pltpu


def _round_up(x, m):
    return (x + m - 1) // m * m


# ---------------------------------------------------------------------------
# Fused temporal-shift + 3x3 same-padding conv kernel
# ---------------------------------------------------------------------------
def _tsm_conv3x3_kernel(xc_ref, xn_ref, xp_ref, w_ref, b_ref, col_ref,
                        o_ref, xw_ref, *, fold, W, P, case_a, t_axis):
    # xc_ref : (B, C,  HWp)  current segment, all channels
    # xn_ref : (B, Cn, HWp)  leading channels of segment min(t+1, T-1)
    # xp_ref : (B, Cp, HWp)  channels [fold, 2*fold) (case A) or leading
    #                        channels (case B) of segment max(t-1, 0)
    # w_ref  : (Cout, 9*C)   conv weight, taps ordered (kh, kw, ci)
    # b_ref  : (Cout, 1)     conv bias, f32
    # col_ref: (1, HWp)      int32 column index of every flattened pixel
    # o_ref  : (B, Cout, HWp)
    # xw_ref : VMEM scratch (B, C, HWp + 2P): [P zeros | shifted | P zeros]
    t = pl.program_id(t_axis)
    T = pl.num_programs(t_axis)
    B, C, HWp = xc_ref.shape
    Cout = o_ref.shape[1]
    dt = xc_ref.dtype

    # ---- temporal shift; boundary folds zeroed by scalar predicates ----
    if case_a:
        # fold is sublane-aligned: neighbours arrive as exact fold-channel
        # slabs -> build `shifted` with a sublane-aligned concat, no selects.
        xn = xn_ref[...] * (t < T - 1).astype(dt)      # zero at t == T-1
        xp = xp_ref[...] * (t > 0).astype(dt)          # zero at t == 0
        parts = [xn, xp]
        if 2 * fold < C:
            parts.append(xc_ref[:, 2 * fold:, :])
        shifted = jnp.concatenate(parts, axis=1)
    else:
        # fold not sublane-aligned: neighbours arrive as the leading cB
        # (sublane-rounded) channels; select with channel-iota predicates
        # that already include the sequence-boundary conditions.
        cB = xn_ref.shape[1]
        ch = lax.broadcasted_iota(jnp.int32, (cB, HWp), 0)
        from_next = (ch < fold) & (t < T - 1)
        from_prev = (ch >= fold) & (ch < 2 * fold) & (t > 0)
        keep_cur = ch >= 2 * fold
        zl = jnp.zeros((), dt)
        low = jnp.where(from_next, xn_ref[...],
              jnp.where(from_prev, xp_ref[...],
              jnp.where(keep_cur, xc_ref[:, :cB, :], zl)))
        if cB < C:
            shifted = jnp.concatenate([low, xc_ref[:, cB:, :]], axis=1)
        else:
            shifted = low

    # ---- stage the zero-extended rows once per grid step ----
    zpad = jnp.zeros((B, C, P), dt)
    xw_ref[:, :, :P] = zpad
    xw_ref[:, :, P + HWp:] = zpad
    xw_ref[:, :, P:P + HWp] = shifted

    # ---- hoisted per-step constants ----
    col = col_ref[...]                                  # (1, HWp)
    ok_l = col >= 1                                     # column j-1 exists
    ok_r = col <= W - 2                                 # column j+1 exists
    zero = jnp.zeros((), dt)
    wmat = w_ref[...]                                   # (Cout, 9C)
    bias = jnp.broadcast_to(b_ref[...], (Cout, HWp))    # f32, broadcast once

    # ---- per-image im2col + MXU matmul (fori_loop bounds live ranges) ----
    def conv_one(ib, carry):
        xwi = xw_ref[ib]                                # (C, HWp + 2P)
        taps = []
        for kh in range(3):
            for kw in range(3):
                d = (kh - 1) * W + (kw - 1)
                tap = xwi[:, P + d:P + d + HWp]         # (C, HWp)
                if kw == 0:
                    tap = jnp.where(ok_l, tap, zero)
                elif kw == 2:
                    tap = jnp.where(ok_r, tap, zero)
                taps.append(tap)
        patches = jnp.concatenate(taps, axis=0)         # (9C, HWp)
        acc = jnp.dot(wmat, patches,
                      preferred_element_type=jnp.float32)   # (Cout, HWp) f32
        o_ref[ib] = (acc + bias).astype(o_ref.dtype)
        return carry

    lax.fori_loop(0, B, conv_one, 0, unroll=min(B, 2))


# ---------------------------------------------------------------------------
# Wrapper: same semantics as TemporalShift(Conv2d(C, C, 3, padding=1)).forward
# ---------------------------------------------------------------------------
def temporal_shift_forward(x, conv_weight, conv_bias, *, n_segment=3, n_div=8,
                           b_tile=None, compute_dtype=None):
    """x: (NT, C, H, W) NCHW.  Returns (NT, Cout, H, W) in x.dtype."""
    nt, c, h, w = x.shape
    if nt % n_segment != 0:
        raise ValueError("nt must be divisible by n_segment")
    cout = conv_weight.shape[0]
    assert conv_weight.shape == (cout, c, 3, 3)

    n_batch = nt // n_segment
    fold = c // n_div
    hw = h * w
    hwp = _round_up(hw, 128)                 # lane-dense spatial axis
    P = _round_up(w + 1, 128)                # zero-pad width in the scratch

    cdt = jnp.dtype(compute_dtype) if compute_dtype is not None else jnp.dtype(x.dtype)
    csz = cdt.itemsize
    osz = jnp.dtype(x.dtype).itemsize
    sub = {4: 8, 2: 16, 1: 32}.get(csz, 8)   # sublane tile for compute dtype

    # --- channel width of each temporal-neighbour fetch -----------------
    case_a = (fold > 0) and (fold % sub == 0) and (2 * fold <= c)
    if case_a:
        cn, cp, cp_blk = fold, fold, 1       # exact fold-channel slabs
    else:
        cb = min(_round_up(max(2 * fold, 1), sub), c)
        if cb >= c:
            cb = c                           # no narrowing possible
        cn, cp, cp_blk = cb, cb, 0

    # --- wrapper-side layout: contiguous reshape, optional cast / pad ---
    xf = x.reshape(nt, c, hw)
    if cdt != x.dtype:
        xf = xf.astype(cdt)
    if hwp != hw:
        xf = jnp.pad(xf, ((0, 0), (0, 0), (0, hwp - hw)))
    xr = xf.reshape(n_batch, n_segment, c, hwp)

    w2 = jnp.transpose(conv_weight, (0, 2, 3, 1)).reshape(cout, 9 * c).astype(cdt)
    b2 = conv_bias.reshape(cout, 1).astype(jnp.float32)
    col_np = np.tile(np.arange(w, dtype=np.int32), h)
    if hwp != hw:
        col_np = np.pad(col_np, (0, hwp - hw))
    col = jnp.asarray(col_np.reshape(1, hwp))

    # --- generation-aware VMEM budget + honest per-step footprint -------
    try:
        vmem_cap = int(getattr(pltpu.get_tpu_info(), "vmem_capacity_bytes", 0))
    except Exception:
        vmem_cap = 0
    if not vmem_cap:
        vmem_cap = 64 << 20                  # conservative (v7x physical)
    vmem_limit = min((vmem_cap * 3) // 4, 100 << 20)

    def footprint(bt):
        act_in = 2 * bt * (c + cn + cp) * hwp * csz       # double-buffered
        act_out = 2 * bt * cout * hwp * osz
        params = 2 * (cout * 9 * c * csz + cout * 4 + hwp * 4)
        scratch = bt * c * (hwp + 2 * P) * csz
        interm = (bt * c + 12 * c) * hwp * csz + 2 * cout * hwp * 4
        return act_in + act_out + params + scratch + interm

    if b_tile is None:
        budget = int(vmem_limit * 0.7)
        fits = [d for d in range(1, min(n_batch, 8) + 1)
                if n_batch % d == 0 and footprint(d) <= budget]
        if not fits:
            fits = [1]
        # keep >= 2 steps on the leading parallel axis when possible (v7x 2 TCs)
        pref = [d for d in fits if n_batch // d >= 2]
        b_tile = max(pref) if pref else max(fits)
    assert n_batch % b_tile == 0

    # --- grid: larger parallel axis first --------------------------------
    gb = n_batch // b_tile
    t_last = n_segment - 1
    if gb >= n_segment:
        grid, t_axis = (gb, n_segment), 1
        bt_of = lambda i, j: (i, j)
    else:
        grid, t_axis = (n_segment, gb), 0
        bt_of = lambda i, j: (j, i)

    def cur_map(i, j):
        b, t = bt_of(i, j)
        return (b, t, 0, 0)

    def nxt_map(i, j):
        b, t = bt_of(i, j)
        return (b, jnp.minimum(t + 1, t_last), 0, 0)

    def prv_map(i, j):
        b, t = bt_of(i, j)
        return (b, jnp.maximum(t - 1, 0), cp_blk, 0)

    cost = pl.CostEstimate(
        flops=2 * nt * hwp * 9 * c * cout,
        transcendentals=0,
        bytes_accessed=(nt * (c + cn + cp) * hwp * csz
                        + cout * 9 * c * csz + cout * 4 + hwp * 4
                        + nt * cout * hwp * osz))

    kernel = functools.partial(_tsm_conv3x3_kernel, fold=fold, W=w, P=P,
                               case_a=case_a, t_axis=t_axis)

    out = pl.pallas_call(
        kernel,
        out_shape=jax.ShapeDtypeStruct((n_batch, n_segment, cout, hwp), x.dtype),
        grid_spec=pltpu.PrefetchScalarGridSpec(
            num_scalar_prefetch=0,
            grid=grid,
            in_specs=[
                pl.BlockSpec((b_tile, None, c, hwp), cur_map),
                pl.BlockSpec((b_tile, None, cn, hwp), nxt_map),
                pl.BlockSpec((b_tile, None, cp, hwp), prv_map),
                pl.BlockSpec((cout, 9 * c), lambda i, j: (0, 0)),
                pl.BlockSpec((cout, 1), lambda i, j: (0, 0)),
                pl.BlockSpec((1, hwp), lambda i, j: (0, 0)),
            ],
            out_specs=pl.BlockSpec((b_tile, None, cout, hwp), cur_map),
            scratch_shapes=[pltpu.VMEM((b_tile, c, hwp + 2 * P), cdt)],
        ),
        compiler_params=pltpu.CompilerParams(
            dimension_semantics=("parallel", "parallel"),
            vmem_limit_bytes=int(vmem_limit)),
        cost_estimate=cost,
    )(xr, xr, xr, w2, b2, col)

    out = out.reshape(nt, cout, hwp)
    if hwp != hw:
        out = out[:, :, :hw]
    return out.reshape(nt, cout, h, w)


# ---------------------------------------------------------------------------
# Pure-JAX reference for correctness checking
# ---------------------------------------------------------------------------
def _shift_ref(x, n_segment, fold_div):
    nt, c, h, w = x.shape
    nb = nt // n_segment
    xr = x.reshape(nb, n_segment, c, h, w)
    fold = c // fold_div
    out = jnp.zeros_like(xr)
    out = out.at[:, :-1, :fold].set(xr[:, 1:, :fold])
    out = out.at[:, 1:, fold:2 * fold].set(xr[:, :-1, fold:2 * fold])
    out = out.at[:, :, 2 * fold:].set(xr[:, :, 2 * fold:])
    return out.reshape(nt, c, h, w)


def _forward_ref(x, conv_weight, conv_bias, *, n_segment=3, n_div=8):
    s = _shift_ref(x, n_segment, n_div)
    y = lax.conv_general_dilated(
        s, conv_weight, window_strides=(1, 1), padding=((1, 1), (1, 1)),
        dimension_numbers=("NCHW", "OIHW", "NCHW"),
        precision=lax.Precision.HIGHEST)
    return y + conv_bias[None, :, None, None]


if __name__ == "__main__":
    root = jax.random.PRNGKey(0)

    def check(n_batch, n_segment, c, h, w, n_div, compute_dtype, tol, tag):
        kx, kw_, kb = jax.random.split(jax.random.fold_in(root, tag), 3)
        nt = n_batch * n_segment
        x = jax.random.normal(kx, (nt, c, h, w), dtype=jnp.float32)
        wgt = jax.random.normal(kw_, (c, c, 3, 3), dtype=jnp.float32) * 0.05
        bia = jax.random.normal(kb, (c,), dtype=jnp.float32) * 0.01
        fwd = jax.jit(functools.partial(
            temporal_shift_forward, n_segment=n_segment, n_div=n_div,
            compute_dtype=compute_dtype))
        y = jax.block_until_ready(fwd(x, wgt, bia))
        y_ref = _forward_ref(x, wgt, bia, n_segment=n_segment, n_div=n_div)
        assert y.shape == y_ref.shape
        err = float(jnp.max(jnp.abs(y - y_ref)))
        assert jnp.allclose(y, y_ref, atol=tol, rtol=tol), \
            f"mismatch (tag={tag}, max abs err={err})"

    # f32, lane-aligned spatial, fold < sublane tile (rounded-up neighbour fetch)
    check(2, 3, 16, 16, 16, 8, None, 2e-3, 0)
    # f32, fold multiple of 8 -> exact fold-channel neighbour blocks (case A)
    check(2, 3, 64, 16, 16, 8, None, 2e-3, 1)
    # f32, non-lane-aligned spatial size (wrapper pads / crops the lane axis)
    check(2, 3, 16, 10, 10, 8, None, 2e-3, 2)
    # bf16 activations & weights, f32 accumulation
    check(2, 3, 16, 16, 16, 8, jnp.bfloat16, 8e-2, 3)

    print("KERNEL_OK")
</pallas_src>

<mosaic_0001>
module attributes {stable_mosaic.version = 11 : i64} {
  func.func @_tsm_conv3x3_kernel(%arg0: i32, %arg1: i32, %arg2: memref<1x1x16x256xf32, #tpu.memory_space<vmem>>, %arg3: memref<1x1x8x256xf32, #tpu.memory_space<vmem>>, %arg4: memref<1x1x8x256xf32, #tpu.memory_space<vmem>>, %arg5: memref<16x144xf32, #tpu.memory_space<vmem>>, %arg6: memref<16x1xf32, #tpu.memory_space<vmem>>, %arg7: memref<1x256xi32, #tpu.memory_space<vmem>>, %arg8: memref<1x1x16x256xf32, #tpu.memory_space<vmem>>, %arg9: memref<1x16x512xf32, #tpu.memory_space<vmem>>) attributes {dimension_semantics = [#tpu.dimension_semantics<parallel>, #tpu.dimension_semantics<parallel>], iteration_bounds = array<i64: 3, 2>, scalar_prefetch = 0 : i64, scratch_operands = 1 : i64, tpu.core_type = #tpu.core_type<tc>, window_params = [{transform_indices = @transform_0, window_bounds = array<i64: 1, 1, 16, 256>}, {transform_indices = @transform_1, window_bounds = array<i64: 1, 1, 8, 256>}, {transform_indices = @transform_2, window_bounds = array<i64: 1, 1, 8, 256>}, {pipeline_mode = #tpu.pipeline_mode<synchronous>, transform_indices = @transform_3, window_bounds = array<i64: 16, 144>}, {pipeline_mode = #tpu.pipeline_mode<synchronous>, transform_indices = @transform_4, window_bounds = array<i64: 16, 1>}, {pipeline_mode = #tpu.pipeline_mode<synchronous>, transform_indices = @transform_5, window_bounds = array<i64: 1, 256>}, {transform_indices = @transform_6, window_bounds = array<i64: 1, 1, 16, 256>}]} {
    %0 = tpu.iota {dimensions = array<i32: 0>} : vector<8x256xi32>
    %c2_i32 = arith.constant 2 : i32
    %1 = vector.broadcast %c2_i32 : i32 to vector<8x256xi32>
    %2 = arith.cmpi slt, %0, %1 : vector<8x256xi32>
    %c2_i32_0 = arith.constant 2 : i32
    %3 = arith.cmpi slt, %arg0, %c2_i32_0 : i32
    %4 = vector.broadcast %3 : i1 to vector<8x256xi1>
    %5 = arith.andi %2, %4 : vector<8x256xi1>
    %c2_i32_1 = arith.constant 2 : i32
    %6 = vector.broadcast %c2_i32_1 : i32 to vector<8x256xi32>
    %7 = arith.cmpi sge, %0, %6 : vector<8x256xi32>
    %c4_i32 = arith.constant 4 : i32
    %8 = vector.broadcast %c4_i32 : i32 to vector<8x256xi32>
    %9 = arith.cmpi slt, %0, %8 : vector<8x256xi32>
    %10 = arith.andi %7, %9 : vector<8x256xi1>
    %c0_i32 = arith.constant 0 : i32
    %11 = arith.cmpi sgt, %arg0, %c0_i32 : i32
    %12 = vector.broadcast %11 : i1 to vector<8x256xi1>
    %13 = arith.andi %10, %12 : vector<8x256xi1>
    %c4_i32_2 = arith.constant 4 : i32
    %14 = vector.broadcast %c4_i32_2 : i32 to vector<8x256xi32>
    %15 = arith.cmpi sge, %0, %14 : vector<8x256xi32>
    %c0 = arith.constant 0 : index
    %c0_3 = arith.constant 0 : index
    %c0_4 = arith.constant 0 : index
    %c0_5 = arith.constant 0 : index
    %16 = vector.load %arg3[%c0, %c0_3, %c0_4, %c0_5] : memref<1x1x8x256xf32, #tpu.memory_space<vmem>>, vector<1x1x8x256xf32>
    %17 = vector.shape_cast %16 : vector<1x1x8x256xf32> to vector<1x8x256xf32>
    %c0_6 = arith.constant 0 : index
    %c0_7 = arith.constant 0 : index
    %c0_8 = arith.constant 0 : index
    %c0_9 = arith.constant 0 : index
    %18 = vector.load %arg4[%c0_6, %c0_7, %c0_8, %c0_9] : memref<1x1x8x256xf32, #tpu.memory_space<vmem>>, vector<1x1x8x256xf32>
    %19 = vector.shape_cast %18 : vector<1x1x8x256xf32> to vector<1x8x256xf32>
    %c0_10 = arith.constant 0 : index
    %c0_11 = arith.constant 0 : index
    %c0_12 = arith.constant 0 : index
    %c0_13 = arith.constant 0 : index
    %20 = vector.load %arg2[%c0_10, %c0_11, %c0_12, %c0_13] : memref<1x1x16x256xf32, #tpu.memory_space<vmem>>, vector<1x1x8x256xf32>
    %21 = vector.shape_cast %20 : vector<1x1x8x256xf32> to vector<1x8x256xf32>
    %cst = arith.constant 0.000000e+00 : f32
    %22 = vector.shape_cast %15 : vector<8x256xi1> to vector<1x8x256xi1>
    %23 = vector.broadcast %cst : f32 to vector<1x8x256xf32>
    %24 = arith.select %22, %21, %23 : vector<1x8x256xi1>, vector<1x8x256xf32>
    %25 = vector.shape_cast %13 : vector<8x256xi1> to vector<1x8x256xi1>
    %26 = arith.select %25, %19, %24 : vector<1x8x256xi1>, vector<1x8x256xf32>
    %27 = vector.shape_cast %5 : vector<8x256xi1> to vector<1x8x256xi1>
    %28 = arith.select %27, %17, %26 : vector<1x8x256xi1>, vector<1x8x256xf32>
    %c0_14 = arith.constant 0 : index
    %c0_15 = arith.constant 0 : index
    %c8 = arith.constant 8 : index
    %c0_16 = arith.constant 0 : index
    %29 = vector.load %arg2[%c0_14, %c0_15, %c8, %c0_16] : memref<1x1x16x256xf32, #tpu.memory_space<vmem>>, vector<1x1x8x256xf32>
    %30 = vector.shape_cast %29 : vector<1x1x8x256xf32> to vector<1x8x256xf32>
    %31 = tpu.concatenate %28, %30 in 1 : vector<1x8x256xf32>, vector<1x8x256xf32> -> vector<1x16x256xf32>
    %cst_17 = arith.constant 0.000000e+00 : f32
    %32 = vector.broadcast %cst_17 : f32 to vector<1x16x128xf32>
    %c0_18 = arith.constant 0 : index
    %c0_19 = arith.constant 0 : index
    %c0_20 = arith.constant 0 : index
    %33 = vector.load %arg9[%c0_18, %c0_19, %c0_20] : memref<1x16x512xf32, #tpu.memory_space<vmem>>, vector<1x16x128xf32>
    tpu.vector_store %arg9[%c0_18, %c0_19, %c0_20], %32 {strides = array<i32>} : memref<1x16x512xf32, #tpu.memory_space<vmem>>, vector<1x16x128xf32>,
    %c0_21 = arith.constant 0 : index
    %c0_22 = arith.constant 0 : index
    %c384 = arith.constant 384 : index
    %34 = vector.load %arg9[%c0_21, %c0_22, %c384] : memref<1x16x512xf32, #tpu.memory_space<vmem>>, vector<1x16x128xf32>
    tpu.vector_store %arg9[%c0_21, %c0_22, %c384], %32 {strides = array<i32>} : memref<1x16x512xf32, #tpu.memory_space<vmem>>, vector<1x16x128xf32>,
    %c0_23 = arith.constant 0 : index
    %c0_24 = arith.constant 0 : index
    %c128 = arith.constant 128 : index
    %35 = vector.load %arg9[%c0_23, %c0_24, %c128] : memref<1x16x512xf32, #tpu.memory_space<vmem>>, vector<1x16x256xf32>
    tpu.vector_store %arg9[%c0_23, %c0_24, %c128], %31 {strides = array<i32>} : memref<1x16x512xf32, #tpu.memory_space<vmem>>, vector<1x16x256xf32>,
    %c0_25 = arith.constant 0 : index
    %c0_26 = arith.constant 0 : index
    %36 = vector.load %arg7[%c0_25, %c0_26] : memref<1x256xi32, #tpu.memory_space<vmem>>, vector<1x256xi32>
    %c1_i32 = arith.constant 1 : i32
    %37 = vector.broadcast %c1_i32 : i32 to vector<1x256xi32>
    %38 = arith.cmpi sge, %36, %37 : vector<1x256xi32>
    %c14_i32 = arith.constant 14 : i32
    %39 = vector.broadcast %c14_i32 : i32 to vector<1x256xi32>
    %40 = arith.cmpi sle, %36, %39 : vector<1x256xi32>
    %c0_27 = arith.constant 0 : index
    %c0_28 = arith.constant 0 : index
    %41 = vector.load %arg5[%c0_27, %c0_28] : memref<16x144xf32, #tpu.memory_space<vmem>>, vector<16x144xf32>
    %c0_29 = arith.constant 0 : index
    %c0_30 = arith.constant 0 : index
    %42 = vector.load %arg6[%c0_29, %c0_30] : memref<16x1xf32, #tpu.memory_space<vmem>>, vector<16x1xf32>
    %43 = vector.shape_cast %42 : vector<16x1xf32> to vector<16x1xf32>
    %44 = vector.broadcast %43 : vector<16x1xf32> to vector<16x256xf32>
    %cst_31 = arith.constant 0.000000e+00 : f32
    %c0_i32_32 = arith.constant 0 : i32
    %45 = arith.index_cast %c0_i32_32 : i32 to index
    %c0_33 = arith.constant 0 : index
    %c0_34 = arith.constant 0 : index
    %46 = vector.load %arg9[%45, %c0_33, %c0_34] : memref<1x16x512xf32, #tpu.memory_space<vmem>>, vector<1x16x512xf32>
    %47 = vector.shape_cast %46 : vector<1x16x512xf32> to vector<16x512xf32>
    %48 = vector.extract_strided_slice %47 {offsets = [0, 111], sizes = [16, 256], strides = [1, 1]} : vector<16x512xf32> to vector<16x256xf32>
    %49 = vector.shape_cast %38 : vector<1x256xi1> to vector<1x256xi1>
    %50 = vector.broadcast %49 : vector<1x256xi1> to vector<16x256xi1>
    %51 = vector.broadcast %cst_31 : f32 to vector<16x256xf32>
    %52 = arith.select %50, %48, %51 : vector<16x256xi1>, vector<16x256xf32>
    %53 = vector.extract_strided_slice %47 {offsets = [0, 112], sizes = [16, 256], strides = [1, 1]} : vector<16x512xf32> to vector<16x256xf32>
    %54 = vector.extract_strided_slice %47 {offsets = [0, 113], sizes = [16, 256], strides = [1, 1]} : vector<16x512xf32> to vector<16x256xf32>
    %55 = vector.shape_cast %40 : vector<1x256xi1> to vector<1x256xi1>
    %56 = vector.broadcast %55 : vector<1x256xi1> to vector<16x256xi1>
    %57 = vector.broadcast %cst_31 : f32 to vector<16x256xf32>
    %58 = arith.select %56, %54, %57 : vector<16x256xi1>, vector<16x256xf32>
    %59 = vector.extract_strided_slice %47 {offsets = [0, 127], sizes = [16, 256], strides = [1, 1]} : vector<16x512xf32> to vector<16x256xf32>
    %60 = vector.shape_cast %38 : vector<1x256xi1> to vector<1x256xi1>
    %61 = vector.broadcast %60 : vector<1x256xi1> to vector<16x256xi1>
    %62 = vector.broadcast %cst_31 : f32 to vector<16x256xf32>
    %63 = arith.select %61, %59, %62 : vector<16x256xi1>, vector<16x256xf32>
    %64 = vector.extract_strided_slice %47 {offsets = [0, 128], sizes = [16, 256], strides = [1, 1]} : vector<16x512xf32> to vector<16x256xf32>
    %65 = vector.extract_strided_slice %47 {offsets = [0, 129], sizes = [16, 256], strides = [1, 1]} : vector<16x512xf32> to vector<16x256xf32>
    %66 = vector.shape_cast %40 : vector<1x256xi1> to vector<1x256xi1>
    %67 = vector.broadcast %66 : vector<1x256xi1> to vector<16x256xi1>
    %68 = vector.broadcast %cst_31 : f32 to vector<16x256xf32>
    %69 = arith.select %67, %65, %68 : vector<16x256xi1>, vector<16x256xf32>
    %70 = vector.extract_strided_slice %47 {offsets = [0, 143], sizes = [16, 256], strides = [1, 1]} : vector<16x512xf32> to vector<16x256xf32>
    %71 = vector.shape_cast %38 : vector<1x256xi1> to vector<1x256xi1>
    %72 = vector.broadcast %71 : vector<1x256xi1> to vector<16x256xi1>
    %73 = vector.broadcast %cst_31 : f32 to vector<16x256xf32>
    %74 = arith.select %72, %70, %73 : vector<16x256xi1>, vector<16x256xf32>
    %75 = vector.extract_strided_slice %47 {offsets = [0, 144], sizes = [16, 256], strides = [1, 1]} : vector<16x512xf32> to vector<16x256xf32>
    %76 = vector.extract_strided_slice %47 {offsets = [0, 145], sizes = [16, 256], strides = [1, 1]} : vector<16x512xf32> to vector<16x256xf32>
    %77 = vector.shape_cast %40 : vector<1x256xi1> to vector<1x256xi1>
    %78 = vector.broadcast %77 : vector<1x256xi1> to vector<16x256xi1>
    %79 = vector.broadcast %cst_31 : f32 to vector<16x256xf32>
    %80 = arith.select %78, %76, %79 : vector<16x256xi1>, vector<16x256xf32>
    %81 = tpu.concatenate %52, %53, %58, %63, %64, %69, %74, %75, %80 in 0 : vector<16x256xf32>, vector<16x256xf32>, vector<16x256xf32>, vector<16x256xf32>, vector<16x256xf32>, vector<16x256xf32>, vector<16x256xf32>, vector<16x256xf32>, vector<16x256xf32> -> vector<144x256xf32>
    %cst_35 = arith.constant dense<0.000000e+00> : vector<16x256xf32>
    %82 = tpu.matmul %41, %81, %cst_35 {dimension_numbers = #tpu.dot_dimension_numbers<[1], [0], [0], [1], [0, 0, 1, 1], [], []>} : vector<16x144xf32>, vector<144x256xf32>, vector<16x256xf32> -> vector<16x256xf32>
    %83 = arith.addf %82, %44 : vector<16x256xf32>
    %84 = arith.index_cast %c0_i32_32 : i32 to index
    %c0_36 = arith.constant 0 : index
    %c0_37 = arith.constant 0 : index
    %c0_38 = arith.constant 0 : index
    %85 = vector.load %arg8[%84, %c0_36, %c0_37, %c0_38] : memref<1x1x16x256xf32, #tpu.memory_space<vmem>>, vector<1x1x16x256xf32>
    %86 = vector.shape_cast %85 : vector<1x1x16x256xf32> to vector<16x256xf32>
    %87 = vector.shape_cast %83 : vector<16x256xf32> to vector<1x1x16x256xf32>
    tpu.vector_store %arg8[%84, %c0_36, %c0_37, %c0_38], %87 {strides = array<i32>} : memref<1x1x16x256xf32, #tpu.memory_space<vmem>>, vector<1x1x16x256xf32>,
    %c1_i32_39 = arith.constant 1 : i32
    return
  }
  func.func @transform_0(%arg0: i32, %arg1: i32) -> (i32, i32, i32, i32) {
    %c0_i32 = arith.constant 0 : i32
    %c0_i32_0 = arith.constant 0 : i32
    %c0_i32_1 = arith.constant 0 : i32
    return %arg1, %arg0, %c0_i32, %c0_i32_0 : i32, i32, i32, i32
  }
  func.func @transform_1(%arg0: i32, %arg1: i32) -> (i32, i32, i32, i32) {
    %c1_i32 = arith.constant 1 : i32
    %0 = arith.addi %arg0, %c1_i32 : i32
    %c2_i32 = arith.constant 2 : i32
    %1 = arith.minsi %0, %c2_i32 : i32
    %c0_i32 = arith.constant 0 : i32
    %c0_i32_0 = arith.constant 0 : i32
    %c0_i32_1 = arith.constant 0 : i32
    return %arg1, %1, %c0_i32, %c0_i32_0 : i32, i32, i32, i32
  }
  func.func @transform_2(%arg0: i32, %arg1: i32) -> (i32, i32, i32, i32) {
    %c1_i32 = arith.constant 1 : i32
    %0 = arith.subi %arg0, %c1_i32 : i32
    %c0_i32 = arith.constant 0 : i32
    %1 = arith.maxsi %0, %c0_i32 : i32
    %c0_i32_0 = arith.constant 0 : i32
    %c0_i32_1 = arith.constant 0 : i32
    %c0_i32_2 = arith.constant 0 : i32
    return %arg1, %1, %c0_i32_0, %c0_i32_1 : i32, i32, i32, i32
  }
  func.func @transform_3(%arg0: i32, %arg1: i32) -> (i32, i32) {
    %c0_i32 = arith.constant 0 : i32
    %c0_i32_0 = arith.constant 0 : i32
    %c0_i32_1 = arith.constant 0 : i32
    return %c0_i32, %c0_i32_0 : i32, i32
  }
  func.func @transform_4(%arg0: i32, %arg1: i32) -> (i32, i32) {
    %c0_i32 = arith.constant 0 : i32
    %c0_i32_0 = arith.constant 0 : i32
    %c0_i32_1 = arith.constant 0 : i32
    return %c0_i32, %c0_i32_0 : i32, i32
  }
  func.func @transform_5(%arg0: i32, %arg1: i32) -> (i32, i32) {
    %c0_i32 = arith.constant 0 : i32
    %c0_i32_0 = arith.constant 0 : i32
    %c0_i32_1 = arith.constant 0 : i32
    return %c0_i32, %c0_i32_0 : i32, i32
  }
  func.func @transform_6(%arg0: i32, %arg1: i32) -> (i32, i32, i32, i32) {
    %c0_i32 = arith.constant 0 : i32
    %c0_i32_0 = arith.constant 0 : i32
    %c0_i32_1 = arith.constant 0 : i32
    return %arg1, %arg0, %c0_i32, %c0_i32_0 : i32, i32, i32, i32
  }
}

</mosaic_0001>

<llo_original>
// kernel: temporal_shift_forward.1
$region0: #{temporal_shift_forward.1}
  #allocation0 [shape = 'u32[]', space=smem, size = 0x4, offset = 0x4, fixed_abs, tag = 'smem constant byte address 0x4 - core index']
  #allocation1 [shape = 'u32[144,128]{1,0:T(1,128)}', space=vmem, size = 0x12000, scoped, tag = 'internal scratch']
  #allocation2 [shape = 'f32[1,16,512]{2,1,0:T(8,128)}', space=vmem, size = 0x8000, scoped, tag = 'scratch operand']
  %s0 = inlined_call_operand.vmem [shape: f32[2,3,16,256], index: 0, kind: input, shape index: {}, may-alias: {0,1,2}]
  %s1 = inlined_call_operand.vmem [shape: f32[2,3,16,256], index: 1, kind: input, shape index: {}, may-alias: {0,1,2}]
  %s2 = inlined_call_operand.vmem [shape: f32[2,3,16,256], index: 2, kind: input, shape index: {}, may-alias: {0,1,2}]
  %s3 = inlined_call_operand.vmem [shape: f32[16,144], index: 3, kind: input, shape index: {}]
  %s4 = inlined_call_operand.vmem [shape: f32[16,1], index: 4, kind: input, shape index: {}]
  %s5 = inlined_call_operand.vmem [shape: s32[1,256], index: 5, kind: input, shape index: {}]
  %s6 = inlined_call_operand.vmem [shape: f32[2,3,16,256], index: 6, kind: output, shape index: {}]
  %s7 = sld [smem:[#allocation0]]
  $region57: #{temporal_shift_forward.1} parent=0
    _
  %s9 = ssub.s32 1, %s7
  %s10 = scalar_select 0, %s9, %s7
  loop: start=0, step=1, limit=8
  $region2: #{temporal_shift_forward.1} parent=0 // loop_pre_header
    _
  $region3: #{temporal_shift_forward.1} parent=0 // loop_header
    %s12 = sphi 0, %s16
    %p13 = scmp.ge.s32.totalorder %s12, 8
    %s19 = sphi 0, %s31
    %s20 = sphi 0, %s27
    %s21 = sphi 0, %s19
    %s22 = sphi 0, %s20
    %s23 = sphi 0, %s21
    %s24 = sphi 0, %s22
    %s36 = sphi 0, %s38
    %s39 = sphi 0, %s36
    %s40 = sphi 0, %s39
    %s56 = sphi 0, %s40
    %s70 = sphi 0, %s72
    %s73 = sphi 0, %s70
    %s74 = sphi 0, %s73
    %s90 = sphi 0, %s74
    %s104 = sphi 0, %s106
    %s107 = sphi 0, %s104
    %s108 = sphi 0, %s107
    %s124 = sphi 0, %s108
    %s128 = sphi 0, %s128
    %s130 = sphi 0, %s128
    %s131 = sphi 0, %s130
    %s145 = sphi 0, %s131
    %s149 = sphi 0, %s149
    %s151 = sphi 0, %s149
    %s152 = sphi 0, %s151
    %s166 = sphi 0, %s152
    %s170 = sphi 0, %s170
    %s172 = sphi 0, %s170
    %s173 = sphi 0, %s172
    %s187 = sphi 0, %s173
    %s195 = sphi 0, %s197
    %s198 = sphi 0, %s195
    %s199 = sphi 0, %s198
    %s215 = sphi 0, %s199
  $region4: #{temporal_shift_forward.1} parent=0 // loop_header_branch
    %15 = sbr.rel (%p13) target = $region8
  $region5: #{temporal_shift_forward.1} parent=0 // loop_body
    %s17 = ssub.s32 %s12, 1
    %s18 = ssub.s32 %s12, 2
    %s25 = sadd.s32 1, %s20
    %p26 = scmp.ge.s32.totalorder %s25, 2
    %s27 = scalar_select %p26, 0, %s25
    %s28 = sadd.s32 1, %s19
    %s29 = scalar_select %p26, %s28, %s19
    %p30 = scmp.ge.s32.totalorder %s29, 3
    %s31 = scalar_select %p30, 0, %s29
    %s32 = ssub.s32 %s20, %s27
    %s33 = ssub.s32 %s19, %s31
    %s34 = sor.u32 %s32, %s33
    %p35 = scmp.eq.s32.totalorder %s34, 0
    %s37 = sadd.s32 %s36, 1
    %s38 = scalar_select %p35, %s36, %s37
    %p41 = pneg %p35
    %p42 = scmp.eq.s32.totalorder %s12, 5
    %p43 = por %p41, %p42
    %p44 = scmp.ne.s32.totalorder %s36, %s39
    %p45 = scmp.eq.s32.totalorder %s12, 0
    %p46 = por %p44, %p45
    %p47 = scmp.ne.s32.totalorder %s36, %s39
    %p48 = scmp.eq.s32.totalorder %s17, 5
    %p49 = por %p47, %p48
    %p50 = scmp.ne.s32.totalorder %s39, %s40
    %p51 = scmp.eq.s32.totalorder %s17, 0
    %p52 = por %p50, %p51
    %p53 = scmp.ne.s32.totalorder %s39, %s40
    %p54 = scmp.eq.s32.totalorder %s18, 5
    %p55 = por %p53, %p54
    %p57 = scmp.ne.s32.totalorder %s40, %s56
    %p58 = scmp.eq.s32.totalorder %s18, 0
    %p59 = por %p57, %p58
    %s60 = sadd.s32 %s19, 1
    %p61 = scmp.lt.s32.totalorder %s60, 2
    %s62 = scalar_select %p61, %s60, 2
    %s63 = sadd.s32 %s31, 1
    %p64 = scmp.lt.s32.totalorder %s63, 2
    %s65 = scalar_select %p64, %s63, 2
    %s66 = ssub.s32 %s20, %s27
    %s67 = ssub.s32 %s62, %s65
    %s68 = sor.u32 %s66, %s67
    %p69 = scmp.eq.s32.totalorder %s68, 0
    %s71 = sadd.s32 %s70, 1
    %s72 = scalar_select %p69, %s70, %s71
    %p75 = pneg %p69
    %p76 = scmp.eq.s32.totalorder %s12, 5
    %p77 = por %p75, %p76
    %p78 = scmp.ne.s32.totalorder %s70, %s73
    %p79 = scmp.eq.s32.totalorder %s12, 0
    %p80 = por %p78, %p79
    %p81 = scmp.ne.s32.totalorder %s70, %s73
    %p82 = scmp.eq.s32.totalorder %s17, 5
    %p83 = por %p81, %p82
    %p84 = scmp.ne.s32.totalorder %s73, %s74
    %p85 = scmp.eq.s32.totalorder %s17, 0
    %p86 = por %p84, %p85
    %p87 = scmp.ne.s32.totalorder %s73, %s74
    %p88 = scmp.eq.s32.totalorder %s18, 5
    %p89 = por %p87, %p88
    %p91 = scmp.ne.s32.totalorder %s74, %s90
    %p92 = scmp.eq.s32.totalorder %s18, 0
    %p93 = por %p91, %p92
    %s94 = ssub.s32 %s19, 1
    %p95 = scmp.gt.s32.totalorder %s94, 0
    %s96 = scalar_select %p95, %s94, 0
    %s97 = ssub.s32 %s31, 1
    %p98 = scmp.gt.s32.totalorder %s97, 0
    %s99 = scalar_select %p98, %s97, 0
    %s100 = ssub.s32 %s20, %s27
    %s101 = ssub.s32 %s96, %s99
    %s102 = sor.u32 %s100, %s101
    %p103 = scmp.eq.s32.totalorder %s102, 0
    %s105 = sadd.s32 %s104, 1
    %s106 = scalar_select %p103, %s104, %s105
    %p109 = pneg %p103
    %p110 = scmp.eq.s32.totalorder %s12, 5
    %p111 = por %p109, %p110
    %p112 = scmp.ne.s32.totalorder %s104, %s107
    %p113 = scmp.eq.s32.totalorder %s12, 0
    %p114 = por %p112, %p113
    %p115 = scmp.ne.s32.totalorder %s104, %s107
    %p116 = scmp.eq.s32.totalorder %s17, 5
    %p117 = por %p115, %p116
    %p118 = scmp.ne.s32.totalorder %s107, %s108
    %p119 = scmp.eq.s32.totalorder %s17, 0
    %p120 = por %p118, %p119
    %p121 = scmp.ne.s32.totalorder %s107, %s108
    %p122 = scmp.eq.s32.totalorder %s18, 5
    %p123 = por %p121, %p122
    %p125 = scmp.ne.s32.totalorder %s108, %s124
    %p126 = scmp.eq.s32.totalorder %s18, 0
    %p127 = por %p125, %p126
    %s129 = sadd.s32 %s128, 1
    %p132 = scmp.eq.s32.totalorder %s12, 5
    %p133 = scmp.ne.s32.totalorder %s128, %s130
    %p134 = scmp.eq.s32.totalorder %s12, 0
    %p135 = por %p133, %p134
    %p136 = scmp.ne.s32.totalorder %s128, %s130
    %p137 = scmp.eq.s32.totalorder %s17, 5
    %p138 = por %p136, %p137
    %p139 = scmp.ne.s32.totalorder %s130, %s131
    %p140 = scmp.eq.s32.totalorder %s17, 0
    %p141 = por %p139, %p140
    %p142 = scmp.ne.s32.totalorder %s130, %s131
    %p143 = scmp.eq.s32.totalorder %s18, 5
    %p144 = por %p142, %p143
    %p146 = scmp.ne.s32.totalorder %s131, %s145
    %p147 = scmp.eq.s32.totalorder %s18, 0
    %p148 = por %p146, %p147
    %s150 = sadd.s32 %s149, 1
    %p153 = scmp.eq.s32.totalorder %s12, 5
    %p154 = scmp.ne.s32.totalorder %s149, %s151
    %p155 = scmp.eq.s32.totalorder %s12, 0
    %p156 = por %p154, %p155
    %p157 = scmp.ne.s32.totalorder %s149, %s151
    %p158 = scmp.eq.s32.totalorder %s17, 5
    %p159 = por %p157, %p158
    %p160 = scmp.ne.s32.totalorder %s151, %s152
    %p161 = scmp.eq.s32.totalorder %s17, 0
    %p162 = por %p160, %p161
    %p163 = scmp.ne.s32.totalorder %s151, %s152
    %p164 = scmp.eq.s32.totalorder %s18, 5
    %p165 = por %p163, %p164
    %p167 = scmp.ne.s32.totalorder %s152, %s166
    %p168 = scmp.eq.s32.totalorder %s18, 0
    %p169 = por %p167, %p168
    %s171 = sadd.s32 %s170, 1
    %p174 = scmp.eq.s32.totalorder %s12, 5
    %p175 = scmp.ne.s32.totalorder %s170, %s172
    %p176 = scmp.eq.s32.totalorder %s12, 0
    %p177 = por %p175, %p176
    %p178 = scmp.ne.s32.totalorder %s170, %s172
    %p179 = scmp.eq.s32.totalorder %s17, 5
    %p180 = por %p178, %p179
    %p181 = scmp.ne.s32.totalorder %s172, %s173
    %p182 = scmp.eq.s32.totalorder %s17, 0
    %p183 = por %p181, %p182
    %p184 = scmp.ne.s32.totalorder %s172, %s173
    %p185 = scmp.eq.s32.totalorder %s18, 5
    %p186 = por %p184, %p185
    %p188 = scmp.ne.s32.totalorder %s173, %s187
    %p189 = scmp.eq.s32.totalorder %s18, 0
    %p190 = por %p188, %p189
    %s191 = ssub.s32 %s20, %s27
    %s192 = ssub.s32 %s19, %s31
    %s193 = sor.u32 %s191, %s192
    %p194 = scmp.eq.s32.totalorder %s193, 0
    %s196 = sadd.s32 %s195, 1
    %s197 = scalar_select %p194, %s195, %s196
    %p200 = pneg %p194
    %p201 = scmp.eq.s32.totalorder %s12, 5
    %p202 = por %p200, %p201
    %p203 = scmp.ne.s32.totalorder %s195, %s198
    %p204 = scmp.eq.s32.totalorder %s12, 0
    %p205 = por %p203, %p204
    %p206 = scmp.ne.s32.totalorder %s195, %s198
    %p207 = scmp.eq.s32.totalorder %s17, 5
    %p208 = por %p206, %p207
    %p209 = scmp.ne.s32.totalorder %s198, %s199
    %p210 = scmp.eq.s32.totalorder %s17, 0
    %p211 = por %p209, %p210
    %p212 = scmp.ne.s32.totalorder %s198, %s199
    %p213 = scmp.eq.s32.totalorder %s18, 5
    %p214 = por %p212, %p213
    %p216 = scmp.ne.s32.totalorder %s199, %s215
    %p217 = scmp.eq.s32.totalorder %s18, 0
    %p218 = por %p216, %p217
    %p219 = scmp.le.s32.totalorder 1, %s12
    %p220 = scmp.lt.s32.totalorder %s12, 7
    %p221 = pnand %p219, %p220
    %p222 = pneg %p221
    // Predicated region
    $region9: #{temporal_shift_forward.1} parent=5 // pred_check
      _
    $region10: #{temporal_shift_forward.1} parent=5 // pred_check_branch
      %224 = sbr.rel (%p221) target = $region12
    $region11: #{temporal_shift_forward.1} parent=5 // pred_region
      %s225 = ssub.s32 %s12, 1
      // Predicated region
      $region13: #{temporal_shift_forward.1} parent=11 // pred_check
        %p226 = pneg %p141
      $region14: #{temporal_shift_forward.1} parent=11 // pred_check_branch
        %228 = sbr.rel (%p226) target = $region16
      $region15: #{temporal_shift_forward.1} parent=11 // pred_region
        _
      $region16: #{temporal_shift_forward.1} parent=11 // pred_fallthru
        _
      // Predicated region
      $region17: #{temporal_shift_forward.1} parent=11 // pred_check
        %p229 = pneg %p162
      $region18: #{temporal_shift_forward.1} parent=11 // pred_check_branch
        %231 = sbr.rel (%p229) target = $region20
      $region19: #{temporal_shift_forward.1} parent=11 // pred_region
        _
      $region20: #{temporal_shift_forward.1} parent=11 // pred_fallthru
        _
      // Predicated region
      $region21: #{temporal_shift_forward.1} parent=11 // pred_check
        %p232 = pneg %p183
      $region22: #{temporal_shift_forward.1} parent=11 // pred_check_branch
        %234 = sbr.rel (%p232) target = $region24
      $region23: #{temporal_shift_forward.1} parent=11 // pred_region
        _
      $region24: #{temporal_shift_forward.1} parent=11 // pred_fallthru
        _
    $region12: #{temporal_shift_forward.1} parent=5 // pred_fallthru
      _
    %p235 = scmp.lt.s32.totalorder %s12, 6
    // Predicated region
    $region25: #{temporal_shift_forward.1} parent=5 // pred_check
      %p236 = pneg %p235
    $region26: #{temporal_shift_forward.1} parent=5 // pred_check_branch
      %238 = sbr.rel (%p236) target = $region28
    $region27: #{temporal_shift_forward.1} parent=5 // pred_region
      // Predicated region
      $region29: #{temporal_shift_forward.1} parent=27 // pred_check
        %p239 = pneg %p46
      $region30: #{temporal_shift_forward.1} parent=27 // pred_check_branch
        %241 = sbr.rel (%p239) target = $region32
      $region31: #{temporal_shift_forward.1} parent=27 // pred_region
        %p242 = scmp.lt.s32.totalorder %s20, 1
        %s243 = scalar_select %p242, %s20, 1
        %p244 = scmp.lt.s32.totalorder %s19, 2
        %s245 = scalar_select %p244, %s19, 2
        %s246 = smul.addr %s245, 4
        %s247 = smul.addr %s243, 12
        %s248 = sadd.s32 %s246, %s247
        %s249 = smul.addr %s248, 8
        %s250 = scalar_lea.vmem %s0, %s249
      $region32: #{temporal_shift_forward.1} parent=27 // pred_fallthru
        _
      // Predicated region
      $region33: #{temporal_shift_forward.1} parent=27 // pred_check
        %p251 = pneg %p80
      $region34: #{temporal_shift_forward.1} parent=27 // pred_check_branch
        %253 = sbr.rel (%p251) target = $region36
      $region35: #{temporal_shift_forward.1} parent=27 // pred_region
        %s254 = sadd.s32 %s19, 1
        %p255 = scmp.lt.s32.totalorder %s254, 2
        %s256 = scalar_select %p255, %s254, 2
        %p257 = scmp.lt.s32.totalorder %s20, 1
        %s258 = scalar_select %p257, %s20, 1
        %p259 = scmp.lt.s32.totalorder %s256, 2
        %s260 = scalar_select %p259, %s256, 2
        %s261 = smul.addr %s260, 4
        %s262 = smul.addr %s258, 12
        %s263 = sadd.s32 %s261, %s262
        %s264 = smul.addr %s263, 8
        %s265 = scalar_lea.vmem %s1, %s264
        %s266 = sadd.s32 %s19, 1
        %p267 = scmp.lt.s32.totalorder %s266, 2
        %s268 = scalar_select %p267, %s266, 2
      $region36: #{temporal_shift_forward.1} parent=27 // pred_fallthru
        _
      // Predicated region
      $region37: #{temporal_shift_forward.1} parent=27 // pred_check
        %p269 = pneg %p114
      $region38: #{temporal_shift_forward.1} parent=27 // pred_check_branch
        %271 = sbr.rel (%p269) target = $region40
      $region39: #{temporal_shift_forward.1} parent=27 // pred_region
        %s272 = ssub.s32 %s19, 1
        %p273 = scmp.gt.s32.totalorder %s272, 0
        %s274 = scalar_select %p273, %s272, 0
        %p275 = scmp.lt.s32.totalorder %s20, 1
        %s276 = scalar_select %p275, %s20, 1
        %p277 = scmp.lt.s32.totalorder %s274, 2
        %s278 = scalar_select %p277, %s274, 2
        %s279 = smul.addr %s278, 4
        %s280 = smul.addr %s276, 12
        %s281 = sadd.s32 %s279, %s280
        %s282 = smul.addr %s281, 8
        %s283 = scalar_lea.vmem %s2, %s282
        %s284 = ssub.s32 %s19, 1
        %p285 = scmp.gt.s32.totalorder %s284, 0
        %s286 = scalar_select %p285, %s284, 0
      $region40: #{temporal_shift_forward.1} parent=27 // pred_fallthru
        _
    $region28: #{temporal_shift_forward.1} parent=5 // pred_fallthru
      _
    %p287 = scmp.le.s32.totalorder 1, %s12
    %p288 = scmp.lt.s32.totalorder %s12, 7
    %p289 = pnand %p287, %p288
    %p290 = pneg %p289
    // Predicated region
    $region41: #{temporal_shift_forward.1} parent=5 // pred_check
      _
    $region42: #{temporal_shift_forward.1} parent=5 // pred_check_branch
      %292 = sbr.rel (%p289) target = $region44
    $region43: #{temporal_shift_forward.1} parent=5 // pred_region
      %s293 = ssub.s32 %s12, 1
      %p294 = scmp.lt.s32.totalorder %s22, 1
      %s295 = scalar_select %p294, %s22, 1
      %p296 = scmp.lt.s32.totalorder %s21, 2
      %s297 = scalar_select %p296, %s21, 2
      %s298 = smul.addr %s297, 4
      %s299 = smul.addr %s295, 12
      %s300 = sadd.s32 %s298, %s299
      %s301 = smul.addr %s300, 8
      %s302 = scalar_lea.vmem %s0, %s301
      %p303 = pneg %p52
      %p304 = pneg %p49
      %s305 = sadd.s32 %s21, 1
      %p306 = scmp.lt.s32.totalorder %s305, 2
      %s307 = scalar_select %p306, %s305, 2
      %p308 = scmp.lt.s32.totalorder %s22, 1
      %s309 = scalar_select %p308, %s22, 1
      %p310 = scmp.lt.s32.totalorder %s307, 2
      %s311 = scalar_select %p310, %s307, 2
      %s312 = smul.addr %s311, 4
      %s313 = smul.addr %s309, 12
      %s314 = sadd.s32 %s312, %s313
      %s315 = smul.addr %s314, 8
      %s316 = scalar_lea.vmem %s1, %s315
      %p317 = pneg %p86
      %p318 = pneg %p83
      %s319 = ssub.s32 %s21, 1
      %p320 = scmp.gt.s32.totalorder %s319, 0
      %s321 = scalar_select %p320, %s319, 0
      %p322 = scmp.lt.s32.totalorder %s22, 1
      %s323 = scalar_select %p322, %s22, 1
      %p324 = scmp.lt.s32.totalorder %s321, 2
      %s325 = scalar_select %p324, %s321, 2
      %s326 = smul.addr %s325, 4
      %s327 = smul.addr %s323, 12
      %s328 = sadd.s32 %s326, %s327
      %s329 = smul.addr %s328, 8
      %s330 = scalar_lea.vmem %s2, %s329
      %p331 = pneg %p120
      %p332 = pneg %p117
      %p333 = pneg %p141
      %p334 = pneg %p138
      %p335 = pneg %p162
      %p336 = pneg %p159
      %p337 = pneg %p183
      %p338 = pneg %p180
      %p339 = pneg %p211
      %p340 = pneg %p208
      %p341 = scmp.lt.s32.totalorder %s22, 1
      %s342 = scalar_select %p341, %s22, 1
      %p343 = scmp.lt.s32.totalorder %s21, 2
      %s344 = scalar_select %p343, %s21, 2
      %s345 = smul.addr %s344, 4
      %s346 = smul.addr %s342, 12
      %s347 = sadd.s32 %s345, %s346
      %s348 = smul.addr %s347, 8
      %s349 = scalar_lea.vmem %s6, %s348
      %p350 = scmp.lt.s32.totalorder %s22, 1
      %s351 = scalar_select %p350, %s22, 1
      %p352 = scmp.lt.s32.totalorder %s21, 2
      %s353 = scalar_select %p352, %s21, 2
      %s354 = smul.addr %s353, 4
      %s355 = smul.addr %s351, 12
      %s356 = sadd.s32 %s354, %s355
      %s357 = smul.addr %s356, 8
      %s358 = scalar_lea.vmem %s0, %s357
      %s359 = sadd.s32 %s21, 1
      %p360 = scmp.lt.s32.totalorder %s359, 2
      %s361 = scalar_select %p360, %s359, 2
      %p362 = scmp.lt.s32.totalorder %s22, 1
      %s363 = scalar_select %p362, %s22, 1
      %p364 = scmp.lt.s32.totalorder %s361, 2
      %s365 = scalar_select %p364, %s361, 2
      %s366 = smul.addr %s365, 4
      %s367 = smul.addr %s363, 12
      %s368 = sadd.s32 %s366, %s367
      %s369 = smul.addr %s368, 8
      %s370 = scalar_lea.vmem %s1, %s369
      %s371 = sadd.s32 %s21, 1
      %p372 = scmp.lt.s32.totalorder %s371, 2
      %s373 = scalar_select %p372, %s371, 2
      %s374 = ssub.s32 %s21, 1
      %p375 = scmp.gt.s32.totalorder %s374, 0
      %s376 = scalar_select %p375, %s374, 0
      %p377 = scmp.lt.s32.totalorder %s22, 1
      %s378 = scalar_select %p377, %s22, 1
      %p379 = scmp.lt.s32.totalorder %s376, 2
      %s380 = scalar_select %p379, %s376, 2
      %s381 = smul.addr %s380, 4
      %s382 = smul.addr %s378, 12
      %s383 = sadd.s32 %s381, %s382
      %s384 = smul.addr %s383, 8
      %s385 = scalar_lea.vmem %s2, %s384
      %s386 = ssub.s32 %s21, 1
      %p387 = scmp.gt.s32.totalorder %s386, 0
      %s388 = scalar_select %p387, %s386, 0
      %p389 = scmp.lt.s32.totalorder %s22, 1
      %s390 = scalar_select %p389, %s22, 1
      %p391 = scmp.lt.s32.totalorder %s21, 2
      %s392 = scalar_select %p391, %s21, 2
      %s393 = smul.addr %s392, 4
      %s394 = smul.addr %s390, 12
      %s395 = sadd.s32 %s393, %s394
      %s396 = smul.addr %s395, 8
      %s397 = scalar_lea.vmem %s6, %s396
      %v398 = vlaneseq
      %v399 = vshrl.u32 %v398, 7
      %vm400 = vcmp.lt.s32.totalorder %v399, 2
      %p401 = scmp.lt.s32.totalorder %s21, 2
      %s402 = scalar_select %p401, 1, 0
      %v403 = vstv %s402
      %vm404 = vcmp.eq.s32.totalorder %v403, 1
      %vm405 = vmand %vm400, %vm404
      %vm406 = vcmp.ge.s32.totalorder %v399, 2
      %vm407 = vcmp.lt.s32.totalorder %v399, 4
      %vm408 = vmand %vm406, %vm407
      %p409 = scmp.gt.s32.totalorder %s21, 0
      %s410 = scalar_select %p409, 1, 0
      %v411 = vstv %s410
      %vm412 = vcmp.eq.s32.totalorder %v411, 1
      %vm413 = vmand %vm408, %vm412
      %vm414 = vcmp.ge.s32.totalorder %v399, 4
      %v415 = vld [vmem:[%s370] sm:$0xff]
      %v416 = vld [vmem:[%s370 + $0x8] sm:$0xff]
      %v417 = vld [vmem:[%s385] sm:$0xff]
      %v418 = vld [vmem:[%s385 + $0x8] sm:$0xff]
      %v419 = vld [vmem:[%s358] sm:$0xff]
      %v420 = vld [vmem:[%s358 + $0x8] sm:$0xff]
      %v421 = vsel %vm414, %v419, 0.0
      %v422 = vsel %vm414, %v420, 0.0
      %v423 = vsel %vm413, %v417, %v421
      %v424 = vsel %vm413, %v418, %v422
      %v425 = vsel %vm405, %v415, %v423
      %v426 = vsel %vm405, %v416, %v424
      %v427 = vld [vmem:[%s358 + $0x10] sm:$0xff]
      %v428 = vld [vmem:[%s358 + $0x18] sm:$0xff]
      %429 = vst [vmem:[#allocation2] sm:$0xff] 0.0
      %430 = vst [vmem:[#allocation2 + $0x20] sm:$0xff] 0.0
      %431 = vst [vmem:[#allocation2 + $0x18] sm:$0xff] 0.0
      %432 = vst [vmem:[#allocation2 + $0x38] sm:$0xff] 0.0
      %433 = vst [vmem:[#allocation2 + $0x8] sm:$0xff] %v425
      %434 = vst [vmem:[#allocation2 + $0x10] sm:$0xff] %v426
      %435 = vst [vmem:[#allocation2 + $0x28] sm:$0xff] %v427
      %436 = vst [vmem:[#allocation2 + $0x30] sm:$0xff] %v428
      %v437 = vld [vmem:[%s5] sm:$0x3]
      %vm438 = vcmp.ge.s32.totalorder %v437, 1
      %vm439 = vcmp.le.s32.totalorder %v437, 14
      %v440 = vld [vmem:[%s3] sm:$0xff]
      %v441 = vld [vmem:[%s3 + $0x8] sm:$0xff]
      %v442 = vld [vmem:[%s3 + $0x10] sm:$0xff]
      %v443 = vld [vmem:[%s3 + $0x18] sm:$0xff]
      %v444 = vld [vmem:[%s4] sm:$0xff]
      %v445 = vld [vmem:[%s4 + $0x8] sm:$0xff]
      %447 = vset.pattern.permute.xlu0 0
      %448 = vperm.xlu0 %447, %v444
      %v449 = vpop.permute.xlu0 %448
      %452 = vset.pattern.permute.xlu0 0
      %453 = vperm.xlu0 %452, %v445
      %v454 = vpop.permute.xlu0 %453
      %v456 = vld [vmem:[#allocation2] sm:$0xff]
      %v457 = vld [vmem:[#allocation2 + $0x8] sm:$0xff]
      %v458 = vld [vmem:[#allocation2 + $0x10] sm:$0xff]
      %v459 = vld [vmem:[#allocation2 + $0x18] sm:$0xff]
      %v460 = vld [vmem:[#allocation2 + $0x20] sm:$0xff]
      %v461 = vld [vmem:[#allocation2 + $0x28] sm:$0xff]
      %v462 = vld [vmem:[#allocation2 + $0x30] sm:$0xff]
      %v463 = vld [vmem:[#allocation2 + $0x38] sm:$0xff]
      %v464 = vsel %vm438, 1, 0
      %v465 = vlaneseq
      %v466 = vshrl.u32 %v465, 7
      %v467 = vsub.s32 0, %v466
      %v468 = vrot.slane %v464, %v467
      %v469 = vlaneseq
      %v470 = vshrl.u32 %v469, 7
      %v471 = vsub.s32 1, %v470
      %v472 = vrot.slane %v464, %v471
      %vm473 = vcmp.eq.s32.totalorder %v468, 1
      %vm474 = vcmp.eq.s32.totalorder %v472, 1
      %481 = vrot.lane.b32.xlu0 %v456, 17
      %v482 = vpop.permute.xlu0 %481
      %483 = vrot.lane.b32.xlu0 %v457, 17
      %v484 = vpop.permute.xlu0 %483
      %485 = vrot.lane.b32.xlu0 %v458, 17
      %v486 = vpop.permute.xlu0 %485
      %487 = vrot.lane.b32.xlu0 %v460, 17
      %v488 = vpop.permute.xlu0 %487
      %489 = vrot.lane.b32.xlu0 %v461, 17
      %v490 = vpop.permute.xlu0 %489
      %491 = vrot.lane.b32.xlu0 %v462, 17
      %v492 = vpop.permute.xlu0 %491
      %vm493 = vcmask 138240
      %v494 = vsel %vm493, %v482, %v484
      %v495 = vsel %vm493, %v484, %v486
      %v496 = vsel %vm493, %v488, %v490
      %v497 = vsel %vm493, %v490, %v492
      %v502 = vsel %vm473, %v494, 0.0
      %v503 = vsel %vm474, %v495, 0.0
      %v504 = vsel %vm473, %v496, 0.0
      %v505 = vsel %vm474, %v497, 0.0
      %v506 = vsel %vm439, 1, 0
      %v507 = vlaneseq
      %v508 = vshrl.u32 %v507, 7
      %v509 = vsub.s32 0, %v508
      %v510 = vrot.slane %v506, %v509
      %v511 = vlaneseq
      %v512 = vshrl.u32 %v511, 7
      %v513 = vsub.s32 1, %v512
      %v514 = vrot.slane %v506, %v513
      %vm515 = vcmp.eq.s32.totalorder %v510, 1
      %vm516 = vcmp.eq.s32.totalorder %v514, 1
      %517 = vrot.lane.b32.xlu0 %v456, 15
      %v518 = vpop.permute.xlu0 %517
      %519 = vrot.lane.b32.xlu0 %v457, 15
      %v520 = vpop.permute.xlu0 %519
      %521 = vrot.lane.b32.xlu0 %v458, 15
      %v522 = vpop.permute.xlu0 %521
      %523 = vrot.lane.b32.xlu0 %v460, 15
      %v524 = vpop.permute.xlu0 %523
      %525 = vrot.lane.b32.xlu0 %v461, 15
      %v526 = vpop.permute.xlu0 %525
      %527 = vrot.lane.b32.xlu0 %v462, 15
      %v528 = vpop.permute.xlu0 %527
      %vm529 = vcmask 121856
      %v530 = vsel %vm529, %v518, %v520
      %v531 = vsel %vm529, %v520, %v522
      %v532 = vsel %vm529, %v524, %v526
      %v533 = vsel %vm529, %v526, %v528
      %v538 = vsel %vm515, %v530, 0.0
      %v539 = vsel %vm516, %v531, 0.0
      %v540 = vsel %vm515, %v532, 0.0
      %v541 = vsel %vm516, %v533, 0.0
      %542 = vrot.lane.b32.xlu0 %v456, 1
      %v543 = vpop.permute.xlu0 %542
      %544 = vrot.lane.b32.xlu0 %v457, 1
      %v545 = vpop.permute.xlu0 %544
      %546 = vrot.lane.b32.xlu0 %v458, 1
      %v547 = vpop.permute.xlu0 %546
      %548 = vrot.lane.b32.xlu0 %v460, 1
      %v549 = vpop.permute.xlu0 %548
      %550 = vrot.lane.b32.xlu0 %v461, 1
      %v551 = vpop.permute.xlu0 %550
      %552 = vrot.lane.b32.xlu0 %v462, 1
      %v553 = vpop.permute.xlu0 %552
      %vm554 = vcmask 7168
      %v555 = vsel %vm554, %v543, %v545
      %v556 = vsel %vm554, %v545, %v547
      %v557 = vsel %vm554, %v549, %v551
      %v558 = vsel %vm554, %v551, %v553
      %v563 = vsel %vm473, %v555, 0.0
      %v564 = vsel %vm474, %v556, 0.0
      %v565 = vsel %vm473, %v557, 0.0
      %v566 = vsel %vm474, %v558, 0.0
      %569 = vrot.lane.b32.xlu0 %v457, 127
      %v570 = vpop.permute.xlu0 %569
      %571 = vrot.lane.b32.xlu0 %v458, 127
      %v572 = vpop.permute.xlu0 %571
      %573 = vrot.lane.b32.xlu0 %v459, 127
      %v574 = vpop.permute.xlu0 %573
      %575 = vrot.lane.b32.xlu0 %v461, 127
      %v576 = vpop.permute.xlu0 %575
      %577 = vrot.lane.b32.xlu0 %v462, 127
      %v578 = vpop.permute.xlu0 %577
      %579 = vrot.lane.b32.xlu0 %v463, 127
      %v580 = vpop.permute.xlu0 %579
      %vm581 = vcmask 1039360
      %v582 = vsel %vm581, %v570, %v572
      %v583 = vsel %vm581, %v572, %v574
      %v584 = vsel %vm581, %v576, %v578
      %v585 = vsel %vm581, %v578, %v580
      %v590 = vsel %vm515, %v582, 0.0
      %v591 = vsel %vm516, %v583, 0.0
      %v592 = vsel %vm515, %v584, 0.0
      %v593 = vsel %vm516, %v585, 0.0
      %594 = vrot.lane.b32.xlu0 %v457, 113
      %v595 = vpop.permute.xlu0 %594
      %596 = vrot.lane.b32.xlu0 %v458, 113
      %v597 = vpop.permute.xlu0 %596
      %598 = vrot.lane.b32.xlu0 %v459, 113
      %v599 = vpop.permute.xlu0 %598
      %600 = vrot.lane.b32.xlu0 %v461, 113
      %v601 = vpop.permute.xlu0 %600
      %602 = vrot.lane.b32.xlu0 %v462, 113
      %v603 = vpop.permute.xlu0 %602
      %604 = vrot.lane.b32.xlu0 %v463, 113
      %v605 = vpop.permute.xlu0 %604
      %vm606 = vcmask 924672
      %v607 = vsel %vm606, %v595, %v597
      %v608 = vsel %vm606, %v597, %v599
      %v609 = vsel %vm606, %v601, %v603
      %v610 = vsel %vm606, %v603, %v605
      %v615 = vsel %vm473, %v607, 0.0
      %v616 = vsel %vm474, %v608, 0.0
      %v617 = vsel %vm473, %v609, 0.0
      %v618 = vsel %vm474, %v610, 0.0
      %619 = vrot.lane.b32.xlu0 %v457, 111
      %v620 = vpop.permute.xlu0 %619
      %621 = vrot.lane.b32.xlu0 %v458, 111
      %v622 = vpop.permute.xlu0 %621
      %623 = vrot.lane.b32.xlu0 %v459, 111
      %v624 = vpop.permute.xlu0 %623
      %625 = vrot.lane.b32.xlu0 %v461, 111
      %v626 = vpop.permute.xlu0 %625
      %627 = vrot.lane.b32.xlu0 %v462, 111
      %v628 = vpop.permute.xlu0 %627
      %629 = vrot.lane.b32.xlu0 %v463, 111
      %v630 = vpop.permute.xlu0 %629
      %vm631 = vcmask 908288
      %v632 = vsel %vm631, %v620, %v622
      %v633 = vsel %vm631, %v622, %v624
      %v634 = vsel %vm631, %v626, %v628
      %v635 = vsel %vm631, %v628, %v630
      %v640 = vsel %vm515, %v632, 0.0
      %v641 = vsel %vm516, %v633, 0.0
      %v642 = vsel %vm515, %v634, 0.0
      %v643 = vsel %vm516, %v635, 0.0
      %644 = vrot.lane.b32.xlu0 %v456, 16
      %v645 = vpop.permute.xlu0 %644
      %646 = vrot.lane.b32.xlu0 %v457, 16
      %v647 = vpop.permute.xlu0 %646
      %648 = vrot.lane.b32.xlu0 %v458, 16
      %v649 = vpop.permute.xlu0 %648
      %650 = vrot.lane.b32.xlu0 %v460, 16
      %v651 = vpop.permute.xlu0 %650
      %652 = vrot.lane.b32.xlu0 %v461, 16
      %v653 = vpop.permute.xlu0 %652
      %654 = vrot.lane.b32.xlu0 %v462, 16
      %v655 = vpop.permute.xlu0 %654
      %vm656 = vcmask 130048
      %v657 = vsel %vm656, %v645, %v647
      %v658 = vsel %vm656, %v647, %v649
      %v659 = vsel %vm656, %v651, %v653
      %v660 = vsel %vm656, %v653, %v655
      %665 = vrot.lane.b32.xlu0 %v457, 112
      %v666 = vpop.permute.xlu0 %665
      %667 = vrot.lane.b32.xlu0 %v458, 112
      %v668 = vpop.permute.xlu0 %667
      %669 = vrot.lane.b32.xlu0 %v459, 112
      %v670 = vpop.permute.xlu0 %669
      %671 = vrot.lane.b32.xlu0 %v461, 112
      %v672 = vpop.permute.xlu0 %671
      %673 = vrot.lane.b32.xlu0 %v462, 112
      %v674 = vpop.permute.xlu0 %673
      %675 = vrot.lane.b32.xlu0 %v463, 112
      %v676 = vpop.permute.xlu0 %675
      %vm677 = vcmask 916480
      %v678 = vsel %vm677, %v666, %v668
      %v679 = vsel %vm677, %v668, %v670
      %v680 = vsel %vm677, %v672, %v674
      %v681 = vsel %vm677, %v674, %v676
      %v687 = vsel %vm656, %v441, 0
      %v690 = vsel %vm656, %v443, 0
      %692 = vmatprep.subr.mxu0 %v681
      %693 = vmatpush1.msra.mxu0 %v680
      %694 = vmatprep.subr.mxu0 %v679
      %695 = vmatpush1.msra.mxu0 %v678
      %696 = vmatprep.subr.mxu0 %v618
      %697 = vmatpush1.msra.mxu0 %v617
      %698 = vmatprep.subr.mxu0 %v616
      %699 = vmatpush1.msra.mxu0 %v615
      %700 = vmatprep.subr.mxu0 %v593
      %701 = vmatpush1.msra.mxu0 %v592
      %702 = vmatprep.subr.mxu0 %v591
      %703 = vmatpush1.msra.mxu0 %v590
      %704 = vmatprep.subr.mxu0 %v462
      %705 = vmatpush1.msra.mxu0 %v461
      %706 = vmatprep.subr.mxu0 %v458
      %707 = vmatpush1.msra.mxu0 %v457
      %708 = vmatprep.subr.mxu0 %v566
      %709 = vmatpush1.msra.mxu0 %v565
      %710 = vmatprep.subr.mxu0 %v564
      %711 = vmatpush1.msra.mxu0 %v563
      %712 = vmatprep.subr.mxu0 %v541
      %713 = vmatpush1.msra.mxu0 %v540
      %714 = vmatprep.subr.mxu0 %v539
      %715 = vmatpush1.msra.mxu0 %v538
      %716 = vmatprep.subr.mxu0 %v660
      %717 = vmatpush1.msra.mxu0 %v659
      %718 = vmatprep.subr.mxu0 %v658
      %719 = vmatpush1.msra.mxu0 %v657
      %720 = vmatprep.subr.mxu0 %v505
      %721 = vmatpush1.msra.mxu0 %v504
      %722 = vmatprep.subr.mxu0 %v503
      %723 = vmatpush1.msra.mxu0 %v502
      %724 = vmatprep.subr.mxu0 0.0
      %725 = vmatpush2.msra.mxu0 0.0
      %726 = vmatprep.subr.mxu0 0.0
      %727 = vmatpush2.msra.mxu0 0.0
      %728 = vmatprep.subr.mxu0 0.0
      %729 = vmatpush2.msra.mxu0 0.0
      %730 = vmatprep.subr.mxu0 0.0
      %731 = vmatpush2.msra.mxu0 0.0
      %732 = vmatprep.subr.mxu0 0.0
      %733 = vmatpush2.msra.mxu0 0.0
      %734 = vmatprep.subr.mxu0 0.0
      %735 = vmatpush2.msra.mxu0 0.0
      %736 = vmatprep.subr.mxu0 0.0
      %737 = vmatpush2.msra.mxu0 0.0
      %738 = vmatprep.subr.mxu0 0.0
      %739 = vmatpush2.msra.mxu0 0.0
      %740 = vmatprep.subr.mxu0 0.0
      %741 = vmatpush2.msra.mxu0 0.0
      %742 = vmatprep.subr.mxu0 0.0
      %743 = vmatpush2.msra.mxu0 0.0
      %744 = vmatprep.subr.mxu0 0.0
      %745 = vmatpush2.msra.mxu0 0.0
      %746 = vmatprep.subr.mxu0 0.0
      %747 = vmatpush2.msra.mxu0 0.0
      %748 = vmatprep.subr.mxu0 0.0
      %749 = vmatpush2.msra.mxu0 0.0
      %750 = vmatprep.subr.mxu0 0.0
      %751 = vmatpush2.msra.mxu0 0.0
      %752 = vmatprep.subr.mxu0 %v643
      %753 = vmatpush2.msra.mxu0 %v642
      %754 = vmatprep.subr.mxu0 %v641
      %755 = vmatpush2.msra.mxu0 %v640
      %756 = vmatprep.mubr.f32.mxu0 %v687
      %757 = vmatmul.mubr.f32.gmra.mxu0 %v440
      %v758 = vpop.f32.mrf.mxu0
      %v759 = vadd.f32 %v449, %v758
      %v760 = vpop.f32.mrf.mxu0
      %v761 = vadd.f32 %v449, %v760
      %762 = vmatprep.mubr.f32.mxu0 %v690
      %763 = vmatmul.mubr.f32.gmra.mxu0 %v442
      %v764 = vpop.f32.mrf.mxu0
      %v765 = vadd.f32 %v454, %v764
      %v766 = vpop.f32.mrf.mxu0
      %v767 = vadd.f32 %v454, %v766
      %768 = vdwg.mxu0
      %769 = vst [vmem:[%s397] sm:$0xff] %v759
      %770 = vst [vmem:[%s397 + $0x8] sm:$0xff] %v761
      %771 = vst [vmem:[%s397 + $0x10] sm:$0xff] %v765
      %772 = vst [vmem:[%s397 + $0x18] sm:$0xff] %v767
      %p773 = scmp.lt.s32.totalorder %s22, 1
      %s774 = scalar_select %p773, %s22, 1
      %p775 = scmp.lt.s32.totalorder %s21, 2
      %s776 = scalar_select %p775, %s21, 2
      %s777 = smul.addr %s776, 4
      %s778 = smul.addr %s774, 12
      %s779 = sadd.s32 %s777, %s778
      %s780 = smul.addr %s779, 8
      %s781 = scalar_lea.vmem %s6, %s780
      // Predicated region
      $region45: #{temporal_shift_forward.1} parent=43 // pred_check
        %p782 = pneg %p208
      $region46: #{temporal_shift_forward.1} parent=43 // pred_check_branch
        %784 = sbr.rel (%p782) target = $region48
      $region47: #{temporal_shift_forward.1} parent=43 // pred_region
        _
      $region48: #{temporal_shift_forward.1} parent=43 // pred_fallthru
        _
    $region44: #{temporal_shift_forward.1} parent=5 // pred_fallthru
      _
    %p785 = scmp.le.s32.totalorder 2, %s12
    // Predicated region
    $region49: #{temporal_shift_forward.1} parent=5 // pred_check
      %p786 = pneg %p785
    $region50: #{temporal_shift_forward.1} parent=5 // pred_check_branch
      %788 = sbr.rel (%p786) target = $region52
    $region51: #{temporal_shift_forward.1} parent=5 // pred_region
      %s789 = ssub.s32 %s12, 2
      // Predicated region
      $region53: #{temporal_shift_forward.1} parent=51 // pred_check
        %p790 = pneg %p214
      $region54: #{temporal_shift_forward.1} parent=51 // pred_check_branch
        %792 = sbr.rel (%p790) target = $region56
      $region55: #{temporal_shift_forward.1} parent=51 // pred_region
        %p793 = scmp.lt.s32.totalorder %s24, 1
        %s794 = scalar_select %p793, %s24, 1
        %p795 = scmp.lt.s32.totalorder %s23, 2
        %s796 = scalar_select %p795, %s23, 2
        %s797 = smul.addr %s796, 4
        %s798 = smul.addr %s794, 12
        %s799 = sadd.s32 %s797, %s798
        %s800 = smul.addr %s799, 8
        %s801 = scalar_lea.vmem %s6, %s800
      $region56: #{temporal_shift_forward.1} parent=51 // pred_fallthru
        _
    $region52: #{temporal_shift_forward.1} parent=5 // pred_fallthru
      _
  $region6: #{temporal_shift_forward.1} parent=0 // loop_footer
    %s16 = sadd.s32 1, %s12
  $region7: #{temporal_shift_forward.1} parent=0 // loop_footer_branch
    %11 = sbr.rel target = $region3
  $region8: #{temporal_shift_forward.1} parent=0 // loop_exit
    _

</llo_original>
